<compile_context>
chip_gen: v7x
topology: tpu7x:2x2x1
jax: 0.10.0
libtpu: 0.0.40
codegen_flags: <defaults>
</compile_context>

<pallas_src>
import math
from typing import Any, NamedTuple

import jax
import jax.numpy as jnp
from jax.experimental import pallas as pl
from jax.experimental.pallas import tpu as pltpu

_MiB = 1 << 20


# ----------------------------------------------------------------------------
# Helpers
# ----------------------------------------------------------------------------
def _round_up(n, m):
    return ((n + m - 1) // m) * m


def _pad2(a, rows, cols):
    pr, pc = rows - a.shape[0], cols - a.shape[1]
    if pr or pc:
        a = jnp.pad(a, ((0, pr), (0, pc)))
    return a


def _tpu_generation():
    """Best-effort TPU generation (5/6/7); conservative default on failure."""
    try:
        kind = jax.devices()[0].device_kind.lower()
    except Exception:
        return 6
    for g in (7, 6, 5, 4):
        if f"v{g}" in kind:
            return g
    return 6


def _vmem_budget(gen):
    """(tile budget, hard cap for vmem_limit_bytes) per generation."""
    if gen >= 7:           # 64 MiB physical VMEM per TensorCore
        return 44 * _MiB, 56 * _MiB
    if gen in (5, 6):      # 128 MiB physical
        return 88 * _MiB, 100 * _MiB
    return 20 * _MiB, 24 * _MiB   # unknown / older: be conservative


def _footprint_bytes(tm, th, Ep, cbytes, obytes, resident, wbufs):
    """Estimated VMEM footprint of one grid step (double-buffered blocks)."""
    x_b = 2 * tm * Ep * cbytes                      # x block, double-buffered
    o_b = 2 * tm * Ep * obytes                      # out block, double-buffered
    w_b = wbufs * (Ep * th + th * Ep) * cbytes      # w1 + w2 chunks
    bias_b = 2 * 8 * (th + Ep) * 4                  # (1, th)/(1, Ep), sublane-padded
    h_b = tm * th * 4                               # f32 hidden intermediate
    acc_b = 0 if resident else tm * Ep * 4          # f32 accumulator scratch
    return x_b + o_b + w_b + bias_b + h_b + acc_b


def _pick_hidden_tile(Hp, lane, target):
    """Largest multiple of `lane` that divides Hp and is <= max(target, lane)."""
    target = max(lane, min(target, Hp))
    best = lane
    t = lane
    while t <= target:
        if Hp % t == 0:
            best = t
        t += lane
    return best


def _select_config(M, Ep, Hp, gen, cbytes, obytes, lane, tm=None, th=None):
    """Pick (tm, th, weight_resident, weight_buffers, vmem_limit_bytes)."""
    budget, cap = _vmem_budget(gen)
    Mp8 = _round_up(max(M, 1), 8)

    if tm is None:
        tm = {5: 512, 6: 1024, 7: 512}.get(gen, 512)
    tm = _round_up(min(tm, Mp8), 8)
    if gen >= 7 and Mp8 > 8:
        # Guarantee >=2 blocks on the parallel axis so both TensorCores work.
        tm = min(tm, _round_up(pl.cdiv(Mp8, 2), 8))

    # --- Weight-resident mode: th = Hp, weights DMA'd once for the kernel. ---
    resident = False
    if th is None or th >= Hp:
        tm_floor = min(256, Mp8)   # don't shrink rows below this just for residency
        tm_r = tm
        while (_footprint_bytes(tm_r, Hp, Ep, cbytes, obytes, True, 2) > budget
               and tm_r > tm_floor):
            tm_r = max(tm_floor, _round_up(max(tm_r // 2, 8), 8))
        if _footprint_bytes(tm_r, Hp, Ep, cbytes, obytes, True, 2) <= budget:
            resident, tm, th = True, tm_r, Hp

    # --- Streamed fallback: tile H, shrink until the footprint fits. ---
    wbufs = 2
    if not resident:
        th = _pick_hidden_tile(Hp, lane, 512 if th is None else th)
        while _footprint_bytes(tm, th, Ep, cbytes, obytes, False, 2) > budget:
            if tm > 128:
                tm = max(8, _round_up(tm // 2, 8))
            elif th > lane:
                th = _pick_hidden_tile(Hp, lane, th // 2)
            else:
                break
        # v5e: lowest HBM BW but 128 MiB VMEM -> triple-buffer streamed weights
        # when headroom allows, hiding DMA jitter at the near-balanced roofline.
        if gen == 5 and _footprint_bytes(tm, th, Ep, cbytes, obytes, False, 3) <= budget:
            wbufs = 3

    fp = _footprint_bytes(tm, th, Ep, cbytes, obytes, resident, wbufs)
    vmem_limit = max(min(32 * _MiB, cap), min(cap, fp + max(4 * _MiB, fp // 8)))
    return tm, th, resident, wbufs, int(vmem_limit)


# ----------------------------------------------------------------------------
# Kernels
# ----------------------------------------------------------------------------
def ffn_kernel_resident(x_ref, w1_ref, b1_ref, w2_ref, b2_ref, o_ref):
    # Whole hidden dim resident: single pass, no accumulator scratch needed.
    h = jnp.dot(x_ref[...], w1_ref[...], preferred_element_type=jnp.float32)
    h = jnp.maximum(h + b1_ref[...], 0.0)
    # dropout (eval mode) -> identity
    y = jnp.dot(h.astype(w2_ref.dtype), w2_ref[...],
                preferred_element_type=jnp.float32)
    o_ref[...] = (y + b2_ref[...]).astype(o_ref.dtype)


def ffn_kernel_streamed(x_ref, w1_ref, b1_ref, w2_ref, b2_ref, o_ref, acc_ref):
    # Hidden dim streamed in chunks of th; (tm, Ep) f32 accumulator.
    k = pl.program_id(1)

    @pl.when(k == 0)
    def _():
        acc_ref[...] = jnp.zeros_like(acc_ref)

    h = jnp.dot(x_ref[...], w1_ref[...], preferred_element_type=jnp.float32)
    h = jnp.maximum(h + b1_ref[...], 0.0)
    # dropout (eval mode) -> identity
    acc_ref[...] += jnp.dot(h.astype(w2_ref.dtype), w2_ref[...],
                            preferred_element_type=jnp.float32)

    @pl.when(k == pl.num_programs(1) - 1)
    def _():
        o_ref[...] = (acc_ref[...] + b2_ref[...]).astype(o_ref.dtype)


# ----------------------------------------------------------------------------
# Wrapper
# ----------------------------------------------------------------------------
class PreparedFFN(NamedTuple):
    w1: Any   # (Ep, Hp) compute dtype
    b1: Any   # (1, Hp)  f32
    w2: Any   # (Hp, Ep) compute dtype
    b2: Any   # (1, Ep)  f32
    E: int
    H: int
    Ep: int
    Hp: int
    compute_dtype: Any
    lane: int


def prepare_ffn_params(w1, b1, w2, b2, *, compute_dtype=jnp.bfloat16, lane=None):
    """Pad + cast the weights ONCE (hoisted out of the per-call hot path)."""
    E, H = w1.shape
    assert w2.shape == (H, E) and b1.shape == (H,) and b2.shape == (E,)
    gen = _tpu_generation()
    if lane is None:
        lane = 256 if gen >= 6 else 128   # v6e/v7x MXU is 2x256^2; v5e is 4x128^2
    Ep = _round_up(E, lane)
    Hp = _round_up(H, lane)
    w1p = _pad2(w1, Ep, Hp).astype(compute_dtype)
    w2p = _pad2(w2, Hp, Ep).astype(compute_dtype)
    b1p = _pad2(b1.reshape(1, H).astype(jnp.float32), 1, Hp)
    b2p = _pad2(b2.reshape(1, E).astype(jnp.float32), 1, Ep)
    return PreparedFFN(w1p, b1p, w2p, b2p, E, H, Ep, Hp, compute_dtype, lane)


def feed_forward_prepared(x, p, *, tm=None, th=None, out_dtype=None,
                          vmem_limit_bytes=None):
    """x: (B, S, E) with E == p.E.  Returns (B, S, E) in out_dtype (default bf16)."""
    B, S, E = x.shape
    assert E == p.E, f"input feature dim {E} != prepared dim {p.E}"
    M = B * S
    gen = _tpu_generation()

    compute_dtype = p.compute_dtype
    out_dtype = compute_dtype if out_dtype is None else out_dtype
    cbytes = jnp.dtype(compute_dtype).itemsize
    obytes = jnp.dtype(out_dtype).itemsize

    tm, th, resident, wbufs, vmem_auto = _select_config(
        M, p.Ep, p.Hp, gen, cbytes, obytes, p.lane, tm, th)
    vmem_limit = int(vmem_limit_bytes) if vmem_limit_bytes is not None else vmem_auto

    Mp = _round_up(M, tm)
    x2d = _pad2(x.reshape(M, E), Mp, p.Ep).astype(compute_dtype)

    if resident:
        grid = (Mp // tm,)
        in_specs = [
            pl.BlockSpec((tm, p.Ep), lambda i: (i, 0)),     # x row tile
            pl.BlockSpec((p.Ep, p.Hp), lambda i: (0, 0)),   # w1 (resident)
            pl.BlockSpec((1, p.Hp), lambda i: (0, 0)),      # b1
            pl.BlockSpec((p.Hp, p.Ep), lambda i: (0, 0)),   # w2 (resident)
            pl.BlockSpec((1, p.Ep), lambda i: (0, 0)),      # b2
        ]
        out_specs = pl.BlockSpec((tm, p.Ep), lambda i: (i, 0))
        scratch = []
        kernel = ffn_kernel_resident
        dims = ("parallel",)
        w_refetch = 1
    else:
        grid = (Mp // tm, p.Hp // th)
        wkw = {} if wbufs == 2 else {"pipeline_mode": pl.Buffered(wbufs)}
        in_specs = [
            pl.BlockSpec((tm, p.Ep), lambda i, k: (i, 0)),        # x row tile
            pl.BlockSpec((p.Ep, th), lambda i, k: (0, k), **wkw),  # w1 H-chunk
            pl.BlockSpec((1, th), lambda i, k: (0, k)),           # b1 H-chunk
            pl.BlockSpec((th, p.Ep), lambda i, k: (k, 0), **wkw),  # w2 H-chunk
            pl.BlockSpec((1, p.Ep), lambda i, k: (0, 0)),          # b2 (full)
        ]
        out_specs = pl.BlockSpec((tm, p.Ep), lambda i, k: (i, 0))
        scratch = [pltpu.VMEM((tm, p.Ep), jnp.float32)]
        kernel = ffn_kernel_streamed
        dims = ("parallel", "arbitrary")
        w_refetch = Mp // tm   # weights re-streamed once per row tile

    cost = pl.CostEstimate(
        flops=4 * Mp * p.Ep * p.Hp,   # two matmuls, 2*M*E*H flops each
        transcendentals=0,
        bytes_accessed=(
            Mp * p.Ep * cbytes                      # x in
            + Mp * p.Ep * obytes                    # out
            + w_refetch * 2 * p.Ep * p.Hp * cbytes  # w1 + w2 (re-streamed if tiled)
            + (p.Hp + p.Ep) * 4                     # biases
        ),
    )

    out2d = pl.pallas_call(
        kernel,
        out_shape=jax.ShapeDtypeStruct((Mp, p.Ep), out_dtype),
        grid_spec=pltpu.PrefetchScalarGridSpec(
            num_scalar_prefetch=0,
            grid=grid,
            in_specs=in_specs,
            out_specs=out_specs,
            scratch_shapes=scratch,
        ),
        compiler_params=pltpu.CompilerParams(
            dimension_semantics=dims,
            vmem_limit_bytes=vmem_limit,
        ),
        cost_estimate=cost,
    )(x2d, p.w1, p.b1, p.w2, p.b2)

    return out2d[:M, :E].reshape(B, S, E)


def feed_forward(x, w1, b1, w2, b2, *, compute_dtype=jnp.bfloat16, **kwargs):
    """Convenience wrapper: pads/casts weights per call (prefer the prepared path)."""
    prepared = prepare_ffn_params(w1, b1, w2, b2, compute_dtype=compute_dtype)
    return feed_forward_prepared(x, prepared, **kwargs)


# ----------------------------------------------------------------------------
# Init matching nn.Linear shapes (uniform +-1/sqrt(fan_in)); stored as (in, out).
# ----------------------------------------------------------------------------
def init_params(key, emb_size, h_size, dtype=jnp.float32):
    k1, k2, k3, k4 = jax.random.split(key, 4)
    lim1 = 1.0 / math.sqrt(emb_size)
    lim2 = 1.0 / math.sqrt(h_size)
    w1 = jax.random.uniform(k1, (emb_size, h_size), dtype, -lim1, lim1)
    b1 = jax.random.uniform(k2, (h_size,), dtype, -lim1, lim1)
    w2 = jax.random.uniform(k3, (h_size, emb_size), dtype, -lim2, lim2)
    b2 = jax.random.uniform(k4, (emb_size,), dtype, -lim2, lim2)
    return w1, b1, w2, b2


if __name__ == "__main__":
    B, S, EMB, HID = 2, 8, 32, 64

    key = jax.random.PRNGKey(0)
    kx, kp = jax.random.split(key)
    x = jax.random.normal(kx, (B, S, EMB), jnp.float32)
    w1, b1, w2, b2 = init_params(kp, EMB, HID)

    # Hoisted weight preparation (pad + bf16 cast happens once).
    prepared = prepare_ffn_params(w1, b1, w2, b2)

    # f32-output path (tight check vs matching-precision reference).
    out = jax.block_until_ready(
        feed_forward_prepared(x, prepared, out_dtype=jnp.float32))
    assert out.shape == (B, S, EMB) and out.dtype == jnp.float32

    # Same-precision (bf16 MXU operands, f32 accumulate/bias/ReLU) reference.
    xb, w1b, w2b = (a.astype(jnp.bfloat16) for a in (x, w1, w2))
    h = jnp.maximum(jnp.dot(xb, w1b, preferred_element_type=jnp.float32) + b1, 0.0)
    ref = jnp.dot(h.astype(jnp.bfloat16), w2b, preferred_element_type=jnp.float32) + b2
    assert jnp.allclose(out, ref, atol=1e-3, rtol=1e-3)

    # Loose sanity check against the full-f32 PyTorch-equivalent reference.
    ref32 = jnp.maximum(x @ w1 + b1, 0.0) @ w2 + b2
    assert jnp.allclose(out, ref32, atol=1e-1, rtol=1e-1)

    # Default path: bf16 output (halves output HBM/VMEM traffic).
    out_bf16 = jax.block_until_ready(feed_forward(x, w1, b1, w2, b2))
    assert out_bf16.shape == (B, S, EMB) and out_bf16.dtype == jnp.bfloat16
    assert jnp.allclose(out_bf16.astype(jnp.float32), ref, atol=3e-2, rtol=3e-2)

    print("KERNEL_OK")
</pallas_src>

<mosaic_0001>
module attributes {stable_mosaic.version = 11 : i64} {
  func.func @ffn_kernel_resident(%arg0: i32, %arg1: memref<16x256xbf16, #tpu.memory_space<vmem>>, %arg2: memref<256x256xbf16, #tpu.memory_space<vmem>>, %arg3: memref<1x256xf32, #tpu.memory_space<vmem>>, %arg4: memref<256x256xbf16, #tpu.memory_space<vmem>>, %arg5: memref<1x256xf32, #tpu.memory_space<vmem>>, %arg6: memref<16x256xf32, #tpu.memory_space<vmem>>) attributes {dimension_semantics = [#tpu.dimension_semantics<parallel>], iteration_bounds = array<i64: 1>, scalar_prefetch = 0 : i64, scratch_operands = 0 : i64, tpu.core_type = #tpu.core_type<tc>, window_params = [{transform_indices = @transform_0, window_bounds = array<i64: 16, 256>}, {pipeline_mode = #tpu.pipeline_mode<synchronous>, transform_indices = @transform_1, window_bounds = array<i64: 256, 256>}, {pipeline_mode = #tpu.pipeline_mode<synchronous>, transform_indices = @transform_2, window_bounds = array<i64: 1, 256>}, {pipeline_mode = #tpu.pipeline_mode<synchronous>, transform_indices = @transform_3, window_bounds = array<i64: 256, 256>}, {pipeline_mode = #tpu.pipeline_mode<synchronous>, transform_indices = @transform_4, window_bounds = array<i64: 1, 256>}, {transform_indices = @transform_5, window_bounds = array<i64: 16, 256>}]} {
    %c0 = arith.constant 0 : index
    %c0_0 = arith.constant 0 : index
    %0 = vector.load %arg1[%c0, %c0_0] : memref<16x256xbf16, #tpu.memory_space<vmem>>, vector<16x256xbf16>
    %c0_1 = arith.constant 0 : index
    %c0_2 = arith.constant 0 : index
    %1 = vector.load %arg2[%c0_1, %c0_2] : memref<256x256xbf16, #tpu.memory_space<vmem>>, vector<256x256xbf16>
    %cst = arith.constant dense<0.000000e+00> : vector<16x256xf32>
    %2 = tpu.matmul %0, %1, %cst {dimension_numbers = #tpu.dot_dimension_numbers<[1], [0], [0], [1], [0, 0, 1, 1], [], []>} : vector<16x256xbf16>, vector<256x256xbf16>, vector<16x256xf32> -> vector<16x256xf32>
    %c0_3 = arith.constant 0 : index
    %c0_4 = arith.constant 0 : index
    %3 = vector.load %arg3[%c0_3, %c0_4] : memref<1x256xf32, #tpu.memory_space<vmem>>, vector<1x256xf32>
    %4 = vector.broadcast %3 : vector<1x256xf32> to vector<16x256xf32>
    %5 = arith.addf %2, %4 : vector<16x256xf32>
    %cst_5 = arith.constant 0.000000e+00 : f32
    %6 = vector.broadcast %cst_5 : f32 to vector<16x256xf32>
    %7 = arith.maximumf %5, %6 : vector<16x256xf32>
    %8 = arith.truncf %7 : vector<16x256xf32> to vector<16x256xbf16>
    %c0_6 = arith.constant 0 : index
    %c0_7 = arith.constant 0 : index
    %9 = vector.load %arg4[%c0_6, %c0_7] : memref<256x256xbf16, #tpu.memory_space<vmem>>, vector<256x256xbf16>
    %cst_8 = arith.constant dense<0.000000e+00> : vector<16x256xf32>
    %10 = tpu.matmul %8, %9, %cst_8 {dimension_numbers = #tpu.dot_dimension_numbers<[1], [0], [0], [1], [0, 0, 1, 1], [], []>} : vector<16x256xbf16>, vector<256x256xbf16>, vector<16x256xf32> -> vector<16x256xf32>
    %c0_9 = arith.constant 0 : index
    %c0_10 = arith.constant 0 : index
    %11 = vector.load %arg5[%c0_9, %c0_10] : memref<1x256xf32, #tpu.memory_space<vmem>>, vector<1x256xf32>
    %12 = vector.broadcast %11 : vector<1x256xf32> to vector<16x256xf32>
    %13 = arith.addf %10, %12 : vector<16x256xf32>
    %c0_11 = arith.constant 0 : index
    %c0_12 = arith.constant 0 : index
    %14 = vector.load %arg6[%c0_11, %c0_12] : memref<16x256xf32, #tpu.memory_space<vmem>>, vector<16x256xf32>
    tpu.vector_store %arg6[%c0_11, %c0_12], %13 {strides = array<i32>} : memref<16x256xf32, #tpu.memory_space<vmem>>, vector<16x256xf32>,
    return
  }
  func.func @transform_0(%arg0: i32) -> (i32, i32) {
    %c0_i32 = arith.constant 0 : i32
    %c0_i32_0 = arith.constant 0 : i32
    return %arg0, %c0_i32 : i32, i32
  }
  func.func @transform_1(%arg0: i32) -> (i32, i32) {
    %c0_i32 = arith.constant 0 : i32
    %c0_i32_0 = arith.constant 0 : i32
    %c0_i32_1 = arith.constant 0 : i32
    return %c0_i32, %c0_i32_0 : i32, i32
  }
  func.func @transform_2(%arg0: i32) -> (i32, i32) {
    %c0_i32 = arith.constant 0 : i32
    %c0_i32_0 = arith.constant 0 : i32
    %c0_i32_1 = arith.constant 0 : i32
    return %c0_i32, %c0_i32_0 : i32, i32
  }
  func.func @transform_3(%arg0: i32) -> (i32, i32) {
    %c0_i32 = arith.constant 0 : i32
    %c0_i32_0 = arith.constant 0 : i32
    %c0_i32_1 = arith.constant 0 : i32
    return %c0_i32, %c0_i32_0 : i32, i32
  }
  func.func @transform_4(%arg0: i32) -> (i32, i32) {
    %c0_i32 = arith.constant 0 : i32
    %c0_i32_0 = arith.constant 0 : i32
    %c0_i32_1 = arith.constant 0 : i32
    return %c0_i32, %c0_i32_0 : i32, i32
  }
  func.func @transform_5(%arg0: i32) -> (i32, i32) {
    %c0_i32 = arith.constant 0 : i32
    %c0_i32_0 = arith.constant 0 : i32
    return %arg0, %c0_i32 : i32, i32
  }
}

</mosaic_0001>

<llo_original>
// kernel: tpu_custom_call.1
$region0: #{tpu_custom_call.1}
  #allocation0 [shape = 'u32[]', space=smem, size = 0x4, offset = 0x4, fixed_abs, tag = 'smem constant byte address 0x4 - core index']
  #allocation1 [shape = 'u32[144,128]{1,0:T(1,128)}', space=vmem, size = 0x12000, scoped, tag = 'internal scratch']
  %s0 = inlined_call_operand.hbm [shape: bf16[16,256], index: 0, kind: input, shape index: {}]
  %s1 = inlined_call_operand.hbm [shape: bf16[256,256], index: 1, kind: input, shape index: {}]
  %s2 = inlined_call_operand.vmem [shape: f32[1,256], index: 2, kind: input, shape index: {}]
  %s3 = inlined_call_operand.hbm [shape: bf16[256,256], index: 3, kind: input, shape index: {}]
  %s4 = inlined_call_operand.vmem [shape: f32[1,256], index: 4, kind: input, shape index: {}]
  %s5 = inlined_call_operand.hbm [shape: f32[16,256], index: 5, kind: output, shape index: {}]
  %s6 = sld [smem:[#allocation0]]
  $region42: #{tpu_custom_call.1} parent=0
    _
  %s8 = ssub.s32 1, %s6
  %s9 = scalar_select 0, %s8, %s6
  $region1: #{tpu_custom_call.1} parent=0
    #allocation2 [shape = 'u8[8192]{0}', space=vmem, size = 0x2000, scoped, tag = 'input window, operand 0, single buffered']
    #allocation3 [shape = 's32[1]{0}', space=sflag, size = 0x4, scoped, tag = 'scoped memory for tpu_custom_call.1']
    #allocation4 [shape = 's32[1]{0}', space=sflag, size = 0x4, scoped, tag = 'scoped memory for tpu_custom_call.1']
    #allocation5 [shape = 'u8[131072]{0}', space=vmem, size = 0x20000, scoped, tag = 'input window, operand 1, single buffered']
    #allocation6 [shape = 's32[1]{0}', space=sflag, size = 0x4, scoped, tag = 'scoped memory for tpu_custom_call.1']
    #allocation7 [shape = 'u8[131072]{0}', space=vmem, size = 0x20000, scoped, tag = 'input window, operand 3, single buffered']
    #allocation8 [shape = 'u8[16384]{0}', space=vmem, size = 0x4000, scoped, tag = 'output window, operand 0, single buffered']
    %10 = vsyncpa [#allocation3], 0
    %11 = vsyncpa [#allocation6], 0
    %12 = vsyncpa [#allocation4], 0
    // Predicated region
    $region2: #{tpu_custom_call.1} parent=1 // pred_check
      _
    $region3: #{tpu_custom_call.1} parent=1 // pred_check_branch
      %14 = sbr.rel (0) target = $region5
    $region4: #{tpu_custom_call.1} parent=1 // pred_region
      %s16 = ssub.s32 256, 256
      %17 = vsyncadd [#allocation3], %s16
      %s18 = sshll.u32 [#allocation2], 4
      %s19 = int_to_ptr.vmem [resolvable:$true] %s18
      %24 = dma.hbm_to_vmem [thread:$0]  %s0, 256, %s19, [#allocation3], 128, 128, 8
    $region5: #{tpu_custom_call.1} parent=1 // pred_fallthru
      _
    // Predicated region
    $region6: #{tpu_custom_call.1} parent=1 // pred_check
      _
    $region7: #{tpu_custom_call.1} parent=1 // pred_check_branch
      %26 = sbr.rel (0) target = $region9
    $region8: #{tpu_custom_call.1} parent=1 // pred_region
      %s28 = ssub.s32 4096, 4096
      %29 = vsyncadd [#allocation6], %s28
      %s30 = sshll.u32 [#allocation5], 4
      %s31 = int_to_ptr.vmem [resolvable:$true] %s30
      %36 = dma.hbm_to_vmem [thread:$0]  %s1, 4096, %s31, [#allocation6], 128, 128, 8
    $region9: #{tpu_custom_call.1} parent=1 // pred_fallthru
      _
    // Predicated region
    $region10: #{tpu_custom_call.1} parent=1 // pred_check
      _
    $region11: #{tpu_custom_call.1} parent=1 // pred_check_branch
      %38 = sbr.rel (0) target = $region13
    $region12: #{tpu_custom_call.1} parent=1 // pred_region
      _
    $region13: #{tpu_custom_call.1} parent=1 // pred_fallthru
      _
    // Predicated region
    $region14: #{tpu_custom_call.1} parent=1 // pred_check
      _
    $region15: #{tpu_custom_call.1} parent=1 // pred_check_branch
      %40 = sbr.rel (0) target = $region17
    $region16: #{tpu_custom_call.1} parent=1 // pred_region
      %s42 = ssub.s32 4096, 4096
      %43 = vsyncadd [#allocation6], %s42
      %s44 = sshll.u32 [#allocation7], 4
      %s45 = int_to_ptr.vmem [resolvable:$true] %s44
      %50 = dma.hbm_to_vmem [thread:$0]  %s3, 4096, %s45, [#allocation6], 128, 128, 8
    $region17: #{tpu_custom_call.1} parent=1 // pred_fallthru
      _
    // Predicated region
    $region18: #{tpu_custom_call.1} parent=1 // pred_check
      _
    $region19: #{tpu_custom_call.1} parent=1 // pred_check_branch
      %52 = sbr.rel (0) target = $region21
    $region20: #{tpu_custom_call.1} parent=1 // pred_region
      _
    $region21: #{tpu_custom_call.1} parent=1 // pred_fallthru
      _
    // Predicated region
    $region22: #{tpu_custom_call.1} parent=1 // pred_check
      _
    $region23: #{tpu_custom_call.1} parent=1 // pred_check_branch
      %54 = sbr.rel (0) target = $region25
    $region24: #{tpu_custom_call.1} parent=1 // pred_region
      %55 = dma.done [#allocation3], 256
    $region25: #{tpu_custom_call.1} parent=1 // pred_fallthru
      _
    // Predicated region
    $region26: #{tpu_custom_call.1} parent=1 // pred_check
      _
    $region27: #{tpu_custom_call.1} parent=1 // pred_check_branch
      %57 = sbr.rel (0) target = $region29
    $region28: #{tpu_custom_call.1} parent=1 // pred_region
      %58 = dma.done [#allocation6], 4096
    $region29: #{tpu_custom_call.1} parent=1 // pred_fallthru
      _
    // Predicated region
    $region30: #{tpu_custom_call.1} parent=1 // pred_check
      _
    $region31: #{tpu_custom_call.1} parent=1 // pred_check_branch
      %60 = sbr.rel (0) target = $region33
    $region32: #{tpu_custom_call.1} parent=1 // pred_region
      %61 = dma.done [#allocation6], 4096
    $region33: #{tpu_custom_call.1} parent=1 // pred_fallthru
      _
    %v62 = vld [vmem:[#allocation2] sm:$0xff]
    %v63 = vld [vmem:[#allocation2 + $0x8] sm:$0xff]
    %v64 = vld [vmem:[#allocation5] sm:$0xff]
    %v65 = vld [vmem:[#allocation5 + $0x8] sm:$0xff]
    %v66 = vld [vmem:[#allocation5 + $0x10] sm:$0xff]
    %v67 = vld [vmem:[#allocation5 + $0x18] sm:$0xff]
    %v68 = vld [vmem:[#allocation5 + $0x20] sm:$0xff]
    %v69 = vld [vmem:[#allocation5 + $0x28] sm:$0xff]
    %v70 = vld [vmem:[#allocation5 + $0x30] sm:$0xff]
    %v71 = vld [vmem:[#allocation5 + $0x38] sm:$0xff]
    %v72 = vld [vmem:[#allocation5 + $0x40] sm:$0xff]
    %v73 = vld [vmem:[#allocation5 + $0x48] sm:$0xff]
    %v74 = vld [vmem:[#allocation5 + $0x50] sm:$0xff]
    %v75 = vld [vmem:[#allocation5 + $0x58] sm:$0xff]
    %v76 = vld [vmem:[#allocation5 + $0x60] sm:$0xff]
    %v77 = vld [vmem:[#allocation5 + $0x68] sm:$0xff]
    %v78 = vld [vmem:[#allocation5 + $0x70] sm:$0xff]
    %v79 = vld [vmem:[#allocation5 + $0x78] sm:$0xff]
    %v80 = vld [vmem:[#allocation5 + $0x80] sm:$0xff]
    %v81 = vld [vmem:[#allocation5 + $0x88] sm:$0xff]
    %v82 = vld [vmem:[#allocation5 + $0x90] sm:$0xff]
    %v83 = vld [vmem:[#allocation5 + $0x98] sm:$0xff]
    %v84 = vld [vmem:[#allocation5 + $0xa0] sm:$0xff]
    %v85 = vld [vmem:[#allocation5 + $0xa8] sm:$0xff]
    %v86 = vld [vmem:[#allocation5 + $0xb0] sm:$0xff]
    %v87 = vld [vmem:[#allocation5 + $0xb8] sm:$0xff]
    %v88 = vld [vmem:[#allocation5 + $0xc0] sm:$0xff]
    %v89 = vld [vmem:[#allocation5 + $0xc8] sm:$0xff]
    %v90 = vld [vmem:[#allocation5 + $0xd0] sm:$0xff]
    %v91 = vld [vmem:[#allocation5 + $0xd8] sm:$0xff]
    %v92 = vld [vmem:[#allocation5 + $0xe0] sm:$0xff]
    %v93 = vld [vmem:[#allocation5 + $0xe8] sm:$0xff]
    %v94 = vld [vmem:[#allocation5 + $0xf0] sm:$0xff]
    %v95 = vld [vmem:[#allocation5 + $0xf8] sm:$0xff]
    %v96 = vld [vmem:[%s2] sm:$0x3]
    %v98 = vlaneseq
    %v99 = vshrl.u32 %v98, 7
    %v100 = vsub.s32 0, %v99
    %v101 = vrot.slane %v96, %v100
    %v102 = vlaneseq
    %v103 = vshrl.u32 %v102, 7
    %v104 = vsub.s32 1, %v103
    %v105 = vrot.slane %v96, %v104
    %v110 = vunpack.c.l.b16 %v62
    %v111 = vunpack.c.h.b16 %v62
    %v112 = vunpack.c.l.b16 %v63
    %v113 = vunpack.c.h.b16 %v63
    %v114 = vpack.c.b16 %v112, %v110
    %v115 = vpack.c.b16 %v113, %v111
    %v150 = vunpack.c.l.b16 %v64
    %v151 = vunpack.c.h.b16 %v64
    %v152 = vunpack.c.l.b16 %v65
    %v153 = vunpack.c.h.b16 %v65
    %v154 = vunpack.c.l.b16 %v66
    %v155 = vunpack.c.h.b16 %v66
    %v156 = vunpack.c.l.b16 %v67
    %v157 = vunpack.c.h.b16 %v67
    %v158 = vunpack.c.l.b16 %v68
    %v159 = vunpack.c.h.b16 %v68
    %v160 = vunpack.c.l.b16 %v69
    %v161 = vunpack.c.h.b16 %v69
    %v162 = vunpack.c.l.b16 %v70
    %v163 = vunpack.c.h.b16 %v70
    %v164 = vunpack.c.l.b16 %v71
    %v165 = vunpack.c.h.b16 %v71
    %v166 = vunpack.c.l.b16 %v72
    %v167 = vunpack.c.h.b16 %v72
    %v168 = vunpack.c.l.b16 %v73
    %v169 = vunpack.c.h.b16 %v73
    %v170 = vunpack.c.l.b16 %v74
    %v171 = vunpack.c.h.b16 %v74
    %v172 = vunpack.c.l.b16 %v75
    %v173 = vunpack.c.h.b16 %v75
    %v174 = vunpack.c.l.b16 %v76
    %v175 = vunpack.c.h.b16 %v76
    %v176 = vunpack.c.l.b16 %v77
    %v177 = vunpack.c.h.b16 %v77
    %v178 = vunpack.c.l.b16 %v78
    %v179 = vunpack.c.h.b16 %v78
    %v180 = vunpack.c.l.b16 %v79
    %v181 = vunpack.c.h.b16 %v79
    %v182 = vunpack.c.l.b16 %v80
    %v183 = vunpack.c.h.b16 %v80
    %v184 = vunpack.c.l.b16 %v81
    %v185 = vunpack.c.h.b16 %v81
    %v186 = vunpack.c.l.b16 %v82
    %v187 = vunpack.c.h.b16 %v82
    %v188 = vunpack.c.l.b16 %v83
    %v189 = vunpack.c.h.b16 %v83
    %v190 = vunpack.c.l.b16 %v84
    %v191 = vunpack.c.h.b16 %v84
    %v192 = vunpack.c.l.b16 %v85
    %v193 = vunpack.c.h.b16 %v85
    %v194 = vunpack.c.l.b16 %v86
    %v195 = vunpack.c.h.b16 %v86
    %v196 = vunpack.c.l.b16 %v87
    %v197 = vunpack.c.h.b16 %v87
    %v198 = vunpack.c.l.b16 %v88
    %v199 = vunpack.c.h.b16 %v88
    %v200 = vunpack.c.l.b16 %v89
    %v201 = vunpack.c.h.b16 %v89
    %v202 = vunpack.c.l.b16 %v90
    %v203 = vunpack.c.h.b16 %v90
    %v204 = vunpack.c.l.b16 %v91
    %v205 = vunpack.c.h.b16 %v91
    %v206 = vunpack.c.l.b16 %v92
    %v207 = vunpack.c.h.b16 %v92
    %v208 = vunpack.c.l.b16 %v93
    %v209 = vunpack.c.h.b16 %v93
    %v210 = vunpack.c.l.b16 %v94
    %v211 = vunpack.c.h.b16 %v94
    %v212 = vunpack.c.l.b16 %v95
    %v213 = vunpack.c.h.b16 %v95
    %v214 = vpack.c.b16 %v152, %v150
    %v215 = vpack.c.b16 %v153, %v151
    %v216 = vpack.c.b16 %v156, %v154
    %v217 = vpack.c.b16 %v157, %v155
    %v218 = vpack.c.b16 %v160, %v158
    %v219 = vpack.c.b16 %v161, %v159
    %v220 = vpack.c.b16 %v164, %v162
    %v221 = vpack.c.b16 %v165, %v163
    %v222 = vpack.c.b16 %v168, %v166
    %v223 = vpack.c.b16 %v169, %v167
    %v224 = vpack.c.b16 %v172, %v170
    %v225 = vpack.c.b16 %v173, %v171
    %v226 = vpack.c.b16 %v176, %v174
    %v227 = vpack.c.b16 %v177, %v175
    %v228 = vpack.c.b16 %v180, %v178
    %v229 = vpack.c.b16 %v181, %v179
    %v230 = vpack.c.b16 %v184, %v182
    %v231 = vpack.c.b16 %v185, %v183
    %v232 = vpack.c.b16 %v188, %v186
    %v233 = vpack.c.b16 %v189, %v187
    %v234 = vpack.c.b16 %v192, %v190
    %v235 = vpack.c.b16 %v193, %v191
    %v236 = vpack.c.b16 %v196, %v194
    %v237 = vpack.c.b16 %v197, %v195
    %v238 = vpack.c.b16 %v200, %v198
    %v239 = vpack.c.b16 %v201, %v199
    %v240 = vpack.c.b16 %v204, %v202
    %v241 = vpack.c.b16 %v205, %v203
    %v242 = vpack.c.b16 %v208, %v206
    %v243 = vpack.c.b16 %v209, %v207
    %v244 = vpack.c.b16 %v212, %v210
    %v245 = vpack.c.b16 %v213, %v211
    %278 = vmatprep.subr.bf16.mxu0 %v215
    %279 = vmatpush1.bf16.msra.mxu0 %v214
    %280 = vmatprep.subr.bf16.mxu0 %v217
    %281 = vmatpush1.bf16.msra.mxu0 %v216
    %282 = vmatprep.subr.bf16.mxu0 %v219
    %283 = vmatpush1.bf16.msra.mxu0 %v218
    %284 = vmatprep.subr.bf16.mxu0 %v221
    %285 = vmatpush1.bf16.msra.mxu0 %v220
    %286 = vmatprep.subr.bf16.mxu0 %v223
    %287 = vmatpush1.bf16.msra.mxu0 %v222
    %288 = vmatprep.subr.bf16.mxu0 %v225
    %289 = vmatpush1.bf16.msra.mxu0 %v224
    %290 = vmatprep.subr.bf16.mxu0 %v227
    %291 = vmatpush1.bf16.msra.mxu0 %v226
    %292 = vmatprep.subr.bf16.mxu0 %v229
    %293 = vmatpush1.bf16.msra.mxu0 %v228
    %294 = vmatprep.subr.bf16.mxu0 %v231
    %295 = vmatpush1.bf16.msra.mxu0 %v230
    %296 = vmatprep.subr.bf16.mxu0 %v233
    %297 = vmatpush1.bf16.msra.mxu0 %v232
    %298 = vmatprep.subr.bf16.mxu0 %v235
    %299 = vmatpush1.bf16.msra.mxu0 %v234
    %300 = vmatprep.subr.bf16.mxu0 %v237
    %301 = vmatpush1.bf16.msra.mxu0 %v236
    %302 = vmatprep.subr.bf16.mxu0 %v239
    %303 = vmatpush1.bf16.msra.mxu0 %v238
    %304 = vmatprep.subr.bf16.mxu0 %v241
    %305 = vmatpush1.bf16.msra.mxu0 %v240
    %306 = vmatprep.subr.bf16.mxu0 %v243
    %307 = vmatpush1.bf16.msra.mxu0 %v242
    %308 = vmatprep.subr.bf16.mxu0 %v245
    %309 = vmatpush1.bf16.msra.mxu0 %v244
    %310 = vmatprep.mubr.bf16.mxu0 %v115
    %311 = vmatmul.mubr.bf16.gmra.mrb[0].mxu0 %v114
    %v312 = vpop.f32.mrb[0].mxu0
    %v313 = vadd.f32 %v101, %v312
    %v314 = vpop.f32.mrb[0].mxu0
    %v315 = vadd.f32 %v105, %v314
    %v316 = vpop.f32.mrb[0].mxu0
    %v317 = vadd.f32 %v101, %v316
    %v318 = vpop.f32.mrb[0].mxu0
    %v319 = vadd.f32 %v105, %v318
    %320 = vdwg.mxu0
    %v321 = vmax.f32 %v313, 0.0
    %v322 = vmax.f32 %v315, 0.0
    %v323 = vmax.f32 %v317, 0.0
    %v324 = vmax.f32 %v319, 0.0
    %v325 = vpack.c.bf16 %v323, %v321
    %v326 = vpack.c.bf16 %v324, %v322
    %v327 = vld [vmem:[#allocation7] sm:$0xff]
    %v328 = vld [vmem:[#allocation7 + $0x8] sm:$0xff]
    %v329 = vld [vmem:[#allocation7 + $0x10] sm:$0xff]
    %v330 = vld [vmem:[#allocation7 + $0x18] sm:$0xff]
    %v331 = vld [vmem:[#allocation7 + $0x20] sm:$0xff]
    %v332 = vld [vmem:[#allocation7 + $0x28] sm:$0xff]
    %v333 = vld [vmem:[#allocation7 + $0x30] sm:$0xff]
    %v334 = vld [vmem:[#allocation7 + $0x38] sm:$0xff]
    %v335 = vld [vmem:[#allocation7 + $0x40] sm:$0xff]
    %v336 = vld [vmem:[#allocation7 + $0x48] sm:$0xff]
    %v337 = vld [vmem:[#allocation7 + $0x50] sm:$0xff]
    %v338 = vld [vmem:[#allocation7 + $0x58] sm:$0xff]
    %v339 = vld [vmem:[#allocation7 + $0x60] sm:$0xff]
    %v340 = vld [vmem:[#allocation7 + $0x68] sm:$0xff]
    %v341 = vld [vmem:[#allocation7 + $0x70] sm:$0xff]
    %v342 = vld [vmem:[#allocation7 + $0x78] sm:$0xff]
    %v343 = vld [vmem:[#allocation7 + $0x80] sm:$0xff]
    %v344 = vld [vmem:[#allocation7 + $0x88] sm:$0xff]
    %v345 = vld [vmem:[#allocation7 + $0x90] sm:$0xff]
    %v346 = vld [vmem:[#allocation7 + $0x98] sm:$0xff]
    %v347 = vld [vmem:[#allocation7 + $0xa0] sm:$0xff]
    %v348 = vld [vmem:[#allocation7 + $0xa8] sm:$0xff]
    %v349 = vld [vmem:[#allocation7 + $0xb0] sm:$0xff]
    %v350 = vld [vmem:[#allocation7 + $0xb8] sm:$0xff]
    %v351 = vld [vmem:[#allocation7 + $0xc0] sm:$0xff]
    %v352 = vld [vmem:[#allocation7 + $0xc8] sm:$0xff]
    %v353 = vld [vmem:[#allocation7 + $0xd0] sm:$0xff]
    %v354 = vld [vmem:[#allocation7 + $0xd8] sm:$0xff]
    %v355 = vld [vmem:[#allocation7 + $0xe0] sm:$0xff]
    %v356 = vld [vmem:[#allocation7 + $0xe8] sm:$0xff]
    %v357 = vld [vmem:[#allocation7 + $0xf0] sm:$0xff]
    %v358 = vld [vmem:[#allocation7 + $0xf8] sm:$0xff]
    %v359 = vld [vmem:[%s4] sm:$0x3]
    %v361 = vlaneseq
    %v362 = vshrl.u32 %v361, 7
    %v363 = vsub.s32 0, %v362
    %v364 = vrot.slane %v359, %v363
    %v365 = vlaneseq
    %v366 = vshrl.u32 %v365, 7
    %v367 = vsub.s32 1, %v366
    %v368 = vrot.slane %v359, %v367
    %v403 = vunpack.c.l.b16 %v327
    %v404 = vunpack.c.h.b16 %v327
    %v405 = vunpack.c.l.b16 %v328
    %v406 = vunpack.c.h.b16 %v328
    %v407 = vunpack.c.l.b16 %v329
    %v408 = vunpack.c.h.b16 %v329
    %v409 = vunpack.c.l.b16 %v330
    %v410 = vunpack.c.h.b16 %v330
    %v411 = vunpack.c.l.b16 %v331
    %v412 = vunpack.c.h.b16 %v331
    %v413 = vunpack.c.l.b16 %v332
    %v414 = vunpack.c.h.b16 %v332
    %v415 = vunpack.c.l.b16 %v333
    %v416 = vunpack.c.h.b16 %v333
    %v417 = vunpack.c.l.b16 %v334
    %v418 = vunpack.c.h.b16 %v334
    %v419 = vunpack.c.l.b16 %v335
    %v420 = vunpack.c.h.b16 %v335
    %v421 = vunpack.c.l.b16 %v336
    %v422 = vunpack.c.h.b16 %v336
    %v423 = vunpack.c.l.b16 %v337
    %v424 = vunpack.c.h.b16 %v337
    %v425 = vunpack.c.l.b16 %v338
    %v426 = vunpack.c.h.b16 %v338
    %v427 = vunpack.c.l.b16 %v339
    %v428 = vunpack.c.h.b16 %v339
    %v429 = vunpack.c.l.b16 %v340
    %v430 = vunpack.c.h.b16 %v340
    %v431 = vunpack.c.l.b16 %v341
    %v432 = vunpack.c.h.b16 %v341
    %v433 = vunpack.c.l.b16 %v342
    %v434 = vunpack.c.h.b16 %v342
    %v435 = vunpack.c.l.b16 %v343
    %v436 = vunpack.c.h.b16 %v343
    %v437 = vunpack.c.l.b16 %v344
    %v438 = vunpack.c.h.b16 %v344
    %v439 = vunpack.c.l.b16 %v345
    %v440 = vunpack.c.h.b16 %v345
    %v441 = vunpack.c.l.b16 %v346
    %v442 = vunpack.c.h.b16 %v346
    %v443 = vunpack.c.l.b16 %v347
    %v444 = vunpack.c.h.b16 %v347
    %v445 = vunpack.c.l.b16 %v348
    %v446 = vunpack.c.h.b16 %v348
    %v447 = vunpack.c.l.b16 %v349
    %v448 = vunpack.c.h.b16 %v349
    %v449 = vunpack.c.l.b16 %v350
    %v450 = vunpack.c.h.b16 %v350
    %v451 = vunpack.c.l.b16 %v351
    %v452 = vunpack.c.h.b16 %v351
    %v453 = vunpack.c.l.b16 %v352
    %v454 = vunpack.c.h.b16 %v352
    %v455 = vunpack.c.l.b16 %v353
    %v456 = vunpack.c.h.b16 %v353
    %v457 = vunpack.c.l.b16 %v354
    %v458 = vunpack.c.h.b16 %v354
    %v459 = vunpack.c.l.b16 %v355
    %v460 = vunpack.c.h.b16 %v355
    %v461 = vunpack.c.l.b16 %v356
    %v462 = vunpack.c.h.b16 %v356
    %v463 = vunpack.c.l.b16 %v357
    %v464 = vunpack.c.h.b16 %v357
    %v465 = vunpack.c.l.b16 %v358
    %v466 = vunpack.c.h.b16 %v358
    %v467 = vpack.c.b16 %v405, %v403
    %v468 = vpack.c.b16 %v406, %v404
    %v469 = vpack.c.b16 %v409, %v407
    %v470 = vpack.c.b16 %v410, %v408
    %v471 = vpack.c.b16 %v413, %v411
    %v472 = vpack.c.b16 %v414, %v412
    %v473 = vpack.c.b16 %v417, %v415
    %v474 = vpack.c.b16 %v418, %v416
    %v475 = vpack.c.b16 %v421, %v419
    %v476 = vpack.c.b16 %v422, %v420
    %v477 = vpack.c.b16 %v425, %v423
    %v478 = vpack.c.b16 %v426, %v424
    %v479 = vpack.c.b16 %v429, %v427
    %v480 = vpack.c.b16 %v430, %v428
    %v481 = vpack.c.b16 %v433, %v431
    %v482 = vpack.c.b16 %v434, %v432
    %v483 = vpack.c.b16 %v437, %v435
    %v484 = vpack.c.b16 %v438, %v436
    %v485 = vpack.c.b16 %v441, %v439
    %v486 = vpack.c.b16 %v442, %v440
    %v487 = vpack.c.b16 %v445, %v443
    %v488 = vpack.c.b16 %v446, %v444
    %v489 = vpack.c.b16 %v449, %v447
    %v490 = vpack.c.b16 %v450, %v448
    %v491 = vpack.c.b16 %v453, %v451
    %v492 = vpack.c.b16 %v454, %v452
    %v493 = vpack.c.b16 %v457, %v455
    %v494 = vpack.c.b16 %v458, %v456
    %v495 = vpack.c.b16 %v461, %v459
    %v496 = vpack.c.b16 %v462, %v460
    %v497 = vpack.c.b16 %v465, %v463
    %v498 = vpack.c.b16 %v466, %v464
    %531 = vmatprep.subr.bf16.mxu0 %v468
    %532 = vmatpush1.bf16.msra.mxu0 %v467
    %533 = vmatprep.subr.bf16.mxu0 %v470
    %534 = vmatpush1.bf16.msra.mxu0 %v469
    %535 = vmatprep.subr.bf16.mxu0 %v472
    %536 = vmatpush1.bf16.msra.mxu0 %v471
    %537 = vmatprep.subr.bf16.mxu0 %v474
    %538 = vmatpush1.bf16.msra.mxu0 %v473
    %539 = vmatprep.subr.bf16.mxu0 %v476
    %540 = vmatpush1.bf16.msra.mxu0 %v475
    %541 = vmatprep.subr.bf16.mxu0 %v478
    %542 = vmatpush1.bf16.msra.mxu0 %v477
    %543 = vmatprep.subr.bf16.mxu0 %v480
    %544 = vmatpush1.bf16.msra.mxu0 %v479
    %545 = vmatprep.subr.bf16.mxu0 %v482
    %546 = vmatpush1.bf16.msra.mxu0 %v481
    %547 = vmatprep.subr.bf16.mxu0 %v484
    %548 = vmatpush1.bf16.msra.mxu0 %v483
    %549 = vmatprep.subr.bf16.mxu0 %v486
    %550 = vmatpush1.bf16.msra.mxu0 %v485
    %551 = vmatprep.subr.bf16.mxu0 %v488
    %552 = vmatpush1.bf16.msra.mxu0 %v487
    %553 = vmatprep.subr.bf16.mxu0 %v490
    %554 = vmatpush1.bf16.msra.mxu0 %v489
    %555 = vmatprep.subr.bf16.mxu0 %v492
    %556 = vmatpush1.bf16.msra.mxu0 %v491
    %557 = vmatprep.subr.bf16.mxu0 %v494
    %558 = vmatpush1.bf16.msra.mxu0 %v493
    %559 = vmatprep.subr.bf16.mxu0 %v496
    %560 = vmatpush1.bf16.msra.mxu0 %v495
    %561 = vmatprep.subr.bf16.mxu0 %v498
    %562 = vmatpush1.bf16.msra.mxu0 %v497
    %563 = vmatprep.mubr.bf16.mxu0 %v326
    %564 = vmatmul.mubr.bf16.gmra.mrb[0].mxu0 %v325
    %v565 = vpop.f32.mrb[0].mxu0
    %v566 = vadd.f32 %v364, %v565
    %v567 = vpop.f32.mrb[0].mxu0
    %v568 = vadd.f32 %v368, %v567
    %v569 = vpop.f32.mrb[0].mxu0
    %v570 = vadd.f32 %v364, %v569
    %v571 = vpop.f32.mrb[0].mxu0
    %v572 = vadd.f32 %v368, %v571
    %573 = vdwg.mxu0
    %574 = vst [vmem:[#allocation8] sm:$0xff] %v566
    %575 = vst [vmem:[#allocation8 + $0x8] sm:$0xff] %v568
    %576 = vst [vmem:[#allocation8 + $0x10] sm:$0xff] %v570
    %577 = vst [vmem:[#allocation8 + $0x18] sm:$0xff] %v572
    // Predicated region
    $region34: #{tpu_custom_call.1} parent=1 // pred_check
      _
    $region35: #{tpu_custom_call.1} parent=1 // pred_check_branch
      %579 = sbr.rel (0) target = $region37
    $region36: #{tpu_custom_call.1} parent=1 // pred_region
      %s581 = ssub.s32 512, 512
      %582 = vsyncadd [#allocation4], %s581
      %s583 = sshll.u32 [#allocation8], 4
      %s584 = int_to_ptr.vmem [resolvable:$true] %s583
      %589 = dma.vmem_to_hbm [thread:$0]  %s584, 512, %s5, [#allocation4], 256, 256, 16
    $region37: #{tpu_custom_call.1} parent=1 // pred_fallthru
      _
    // Predicated region
    $region38: #{tpu_custom_call.1} parent=1 // pred_check
      _
    $region39: #{tpu_custom_call.1} parent=1 // pred_check_branch
      %591 = sbr.rel (0) target = $region41
    $region40: #{tpu_custom_call.1} parent=1 // pred_region
      %592 = dma.done [#allocation4], 512
    $region41: #{tpu_custom_call.1} parent=1 // pred_fallthru
      _
    %593 = vsyncpa [#allocation3], 1
    %594 = vsyncpa [#allocation6], 1
    %595 = vsyncpa [#allocation4], 1

</llo_original>
